<compile_context>
chip_gen: v7x
topology: tpu7x:2x2x1
jax: 0.10.0
libtpu: 0.0.40
codegen_flags: <defaults>
</compile_context>

<pallas_src>
import jax
import jax.numpy as jnp
from jax.experimental import pallas as pl
from jax.experimental.pallas import tpu as pltpu


def _mlp_decoder_kernel(z_ref, w_ref, b_ref, o_ref):
    # z_ref: (TG*S, Din)   activations for TG groups, flattened rows
    # w_ref: (Dout, Din)   Wy.weight in PyTorch Linear layout (resident)
    # b_ref: (S, Dout)     per-position bias (resident)
    # o_ref: (TG, S, Dout)
    TG, S, Dout = o_ref.shape

    # One MXU matmul for all TG*S rows; contract Din of both operands
    # (B-transposed contraction, handled natively by the MXU — no transpose).
    y = jax.lax.dot_general(
        z_ref[...], w_ref[...],
        dimension_numbers=(((1,), (1,)), ((), ())),
        preferred_element_type=jnp.float32,
        precision=jax.lax.Precision.HIGHEST,
    )  # (TG*S, Dout)

    # Tile-friendly reshape of the lane-dense result + fused bias add.
    o_ref[...] = (y.reshape(TG, S, Dout) + b_ref[...][None, :, :]).astype(o_ref.dtype)


def _choose_group_tile(G, S, Din, Dout, itemsize=4):
    """Largest divisor TG of G such that the tile footprint stays small.

    Budget: 2x double-buffered z tile + 2x out tile + resident weight + bias,
    kept under ~12 MiB (safe for v5e's 16 MiB scoped default and roughly half
    of what one would size for v6e, per v7x guidance).  Also caps flattened
    rows per tile at 4096 (well past the ~512-row roofline knee).
    """
    budget = 12 * 1024 * 1024
    max_rows = 4096
    resident = (Dout * Din + S * Dout) * itemsize
    best = 1
    for tg in range(1, G + 1):
        if G % tg:
            continue
        rows = tg * S
        if rows > max_rows:
            break
        fp = resident + 2 * rows * Din * itemsize + 2 * rows * Dout * itemsize
        if fp <= budget:
            best = tg
    return best


def mlp_decoder(Z, Wy_weight, bias):
    """Z: (B, H, S, Din) f32; Wy_weight: (Dout, Din) (PyTorch Linear layout);
    bias: (S, Dout).  Returns (B, H, S, Dout) f32, matching Wy(Z) + bias."""
    B, H, S, Din = Z.shape
    Dout, Din_w = Wy_weight.shape
    assert Din_w == Din and bias.shape == (S, Dout)

    G = B * H
    TG = _choose_group_tile(G, S, Din, Dout)
    z_flat = Z.reshape(G * S, Din)  # row-major reshape: free, done in HBM

    out = pl.pallas_call(
        _mlp_decoder_kernel,
        out_shape=jax.ShapeDtypeStruct((G, S, Dout), jnp.float32),
        grid=(G // TG,),
        in_specs=[
            # Row tile of flattened activations (pipelined / double-buffered).
            pl.BlockSpec((TG * S, Din), lambda i: (i, 0)),
            # Weight and bias: constant block index -> stay VMEM-resident.
            pl.BlockSpec((Dout, Din), lambda i: (0, 0)),
            pl.BlockSpec((S, Dout), lambda i: (0, 0)),
        ],
        out_specs=pl.BlockSpec((TG, S, Dout), lambda i: (i, 0, 0)),
        compiler_params=pltpu.CompilerParams(
            dimension_semantics=("parallel",),
        ),
    )(z_flat, Wy_weight, bias)
    return out.reshape(B, H, S, Dout)


if __name__ == "__main__":
    # Small shapes consistent with the module's forward signature.
    batch = 2
    num_haplotypes = 4
    seq_length = 16
    inp_dim = 32
    outp_dim = 128   # multiple of 128 -> lane-dense output stores

    key = jax.random.PRNGKey(0)
    k_z, k_w, k_b = jax.random.split(key, 3)
    Z = jax.random.normal(
        k_z, (batch, num_haplotypes, seq_length, inp_dim), dtype=jnp.float32)
    Wy_weight = jax.random.normal(k_w, (outp_dim, inp_dim), dtype=jnp.float32)
    bias = jax.random.normal(k_b, (seq_length, outp_dim), dtype=jnp.float32)

    out = mlp_decoder(Z, Wy_weight, bias)
    out = jax.block_until_ready(out)

    # Pure-JAX reference: Linear(inp_dim, outp_dim, bias=False)(Z) + bias.
    ref = jnp.einsum("bhsd,od->bhso", Z, Wy_weight,
                     precision=jax.lax.Precision.HIGHEST) + bias[None, None]
    assert out.shape == (batch, num_haplotypes, seq_length, outp_dim)
    assert jnp.allclose(out, ref, atol=1e-3, rtol=1e-3), "mismatch vs reference"

    print("KERNEL_OK")
</pallas_src>

<mosaic_0001>
module attributes {stable_mosaic.version = 11 : i64} {
  func.func @_mlp_decoder_kernel(%arg0: i32, %arg1: memref<128x32xf32, #tpu.memory_space<vmem>>, %arg2: memref<128x32xf32, #tpu.memory_space<vmem>>, %arg3: memref<16x128xf32, #tpu.memory_space<vmem>>, %arg4: memref<8x16x128xf32, #tpu.memory_space<vmem>>) attributes {dimension_semantics = [#tpu.dimension_semantics<parallel>], iteration_bounds = array<i64: 1>, scalar_prefetch = 0 : i64, scratch_operands = 0 : i64, tpu.core_type = #tpu.core_type<tc>, window_params = [{transform_indices = @transform_0, window_bounds = array<i64: 128, 32>}, {pipeline_mode = #tpu.pipeline_mode<synchronous>, transform_indices = @transform_1, window_bounds = array<i64: 128, 32>}, {pipeline_mode = #tpu.pipeline_mode<synchronous>, transform_indices = @transform_2, window_bounds = array<i64: 16, 128>}, {transform_indices = @transform_3, window_bounds = array<i64: 8, 16, 128>}]} {
    %c0 = arith.constant 0 : index
    %c0_0 = arith.constant 0 : index
    %0 = vector.load %arg1[%c0, %c0_0] : memref<128x32xf32, #tpu.memory_space<vmem>>, vector<128x32xf32>
    %c0_1 = arith.constant 0 : index
    %c0_2 = arith.constant 0 : index
    %1 = vector.load %arg2[%c0_1, %c0_2] : memref<128x32xf32, #tpu.memory_space<vmem>>, vector<128x32xf32>
    %cst = arith.constant dense<0.000000e+00> : vector<128x128xf32>
    %2 = tpu.matmul %0, %1, %cst {dimension_numbers = #tpu.dot_dimension_numbers<[1], [1], [0], [0], [0, 0, 1, 0], [], []>, precision = #tpu.contract_precision<fp32>} : vector<128x32xf32>, vector<128x32xf32>, vector<128x128xf32> -> vector<128x128xf32>
    %3 = vector.shape_cast %2 : vector<128x128xf32> to vector<8x16x128xf32>
    %c0_3 = arith.constant 0 : index
    %c0_4 = arith.constant 0 : index
    %4 = vector.load %arg3[%c0_3, %c0_4] : memref<16x128xf32, #tpu.memory_space<vmem>>, vector<16x128xf32>
    %5 = vector.shape_cast %4 : vector<16x128xf32> to vector<1x16x128xf32>
    %6 = vector.broadcast %5 : vector<1x16x128xf32> to vector<8x16x128xf32>
    %7 = arith.addf %3, %6 : vector<8x16x128xf32>
    %c0_5 = arith.constant 0 : index
    %c0_6 = arith.constant 0 : index
    %c0_7 = arith.constant 0 : index
    %8 = vector.load %arg4[%c0_5, %c0_6, %c0_7] : memref<8x16x128xf32, #tpu.memory_space<vmem>>, vector<8x16x128xf32>
    tpu.vector_store %arg4[%c0_5, %c0_6, %c0_7], %7 {strides = array<i32>} : memref<8x16x128xf32, #tpu.memory_space<vmem>>, vector<8x16x128xf32>,
    return
  }
  func.func @transform_0(%arg0: i32) -> (i32, i32) {
    %c0_i32 = arith.constant 0 : i32
    %c0_i32_0 = arith.constant 0 : i32
    return %arg0, %c0_i32 : i32, i32
  }
  func.func @transform_1(%arg0: i32) -> (i32, i32) {
    %c0_i32 = arith.constant 0 : i32
    %c0_i32_0 = arith.constant 0 : i32
    %c0_i32_1 = arith.constant 0 : i32
    return %c0_i32, %c0_i32_0 : i32, i32
  }
  func.func @transform_2(%arg0: i32) -> (i32, i32) {
    %c0_i32 = arith.constant 0 : i32
    %c0_i32_0 = arith.constant 0 : i32
    %c0_i32_1 = arith.constant 0 : i32
    return %c0_i32, %c0_i32_0 : i32, i32
  }
  func.func @transform_3(%arg0: i32) -> (i32, i32, i32) {
    %c0_i32 = arith.constant 0 : i32
    %c0_i32_0 = arith.constant 0 : i32
    %c0_i32_1 = arith.constant 0 : i32
    return %arg0, %c0_i32, %c0_i32_0 : i32, i32, i32
  }
}

</mosaic_0001>

<llo_original>
// kernel: tpu_custom_call.1
$region0: #{tpu_custom_call.1}
  #allocation0 [shape = 'u32[]', space=smem, size = 0x4, offset = 0x4, fixed_abs, tag = 'smem constant byte address 0x4 - core index']
  #allocation1 [shape = 'u32[144,128]{1,0:T(1,128)}', space=vmem, size = 0x12000, scoped, tag = 'internal scratch']
  %s0 = inlined_call_operand.vmem [shape: f32[128,32], index: 0, kind: input, shape index: {}]
  %s1 = inlined_call_operand.vmem [shape: f32[128,32], index: 1, kind: input, shape index: {}]
  %s2 = inlined_call_operand.vmem [shape: f32[16,128], index: 2, kind: input, shape index: {}]
  %s3 = inlined_call_operand.hbm [shape: f32[8,16,128], index: 3, kind: output, shape index: {}]
  %s4 = sld [smem:[#allocation0]]
  $region22: #{tpu_custom_call.1} parent=0
    _
  %s6 = ssub.s32 1, %s4
  %s7 = scalar_select 0, %s6, %s4
  $region1: #{tpu_custom_call.1} parent=0
    #allocation2 [shape = 'u8[65536]{0}', space=vmem, size = 0x10000, scoped, tag = 'output window, operand 0, single buffered']
    #allocation3 [shape = 's32[1]{0}', space=sflag, size = 0x4, scoped, tag = 'scoped memory for tpu_custom_call.1']
    %8 = vsyncpa [#allocation3], 0
    // Predicated region
    $region2: #{tpu_custom_call.1} parent=1 // pred_check
      _
    $region3: #{tpu_custom_call.1} parent=1 // pred_check_branch
      %10 = sbr.rel (0) target = $region5
    $region4: #{tpu_custom_call.1} parent=1 // pred_region
      _
    $region5: #{tpu_custom_call.1} parent=1 // pred_fallthru
      _
    // Predicated region
    $region6: #{tpu_custom_call.1} parent=1 // pred_check
      _
    $region7: #{tpu_custom_call.1} parent=1 // pred_check_branch
      %12 = sbr.rel (0) target = $region9
    $region8: #{tpu_custom_call.1} parent=1 // pred_region
      _
    $region9: #{tpu_custom_call.1} parent=1 // pred_fallthru
      _
    // Predicated region
    $region10: #{tpu_custom_call.1} parent=1 // pred_check
      _
    $region11: #{tpu_custom_call.1} parent=1 // pred_check_branch
      %14 = sbr.rel (0) target = $region13
    $region12: #{tpu_custom_call.1} parent=1 // pred_region
      _
    $region13: #{tpu_custom_call.1} parent=1 // pred_fallthru
      _
    %v15 = vld [vmem:[%s0] sm:$0xff]
    %v16 = vld [vmem:[%s0 + $0x8] sm:$0xff]
    %v17 = vld [vmem:[%s0 + $0x10] sm:$0xff]
    %v18 = vld [vmem:[%s0 + $0x18] sm:$0xff]
    %v19 = vld [vmem:[%s0 + $0x20] sm:$0xff]
    %v20 = vld [vmem:[%s0 + $0x28] sm:$0xff]
    %v21 = vld [vmem:[%s0 + $0x30] sm:$0xff]
    %v22 = vld [vmem:[%s0 + $0x38] sm:$0xff]
    %v23 = vld [vmem:[%s0 + $0x40] sm:$0xff]
    %v24 = vld [vmem:[%s0 + $0x48] sm:$0xff]
    %v25 = vld [vmem:[%s0 + $0x50] sm:$0xff]
    %v26 = vld [vmem:[%s0 + $0x58] sm:$0xff]
    %v27 = vld [vmem:[%s0 + $0x60] sm:$0xff]
    %v28 = vld [vmem:[%s0 + $0x68] sm:$0xff]
    %v29 = vld [vmem:[%s0 + $0x70] sm:$0xff]
    %v30 = vld [vmem:[%s0 + $0x78] sm:$0xff]
    %v31 = vld [vmem:[%s1] sm:$0xff]
    %v32 = vld [vmem:[%s1 + $0x8] sm:$0xff]
    %v33 = vld [vmem:[%s1 + $0x10] sm:$0xff]
    %v34 = vld [vmem:[%s1 + $0x18] sm:$0xff]
    %v35 = vld [vmem:[%s1 + $0x20] sm:$0xff]
    %v36 = vld [vmem:[%s1 + $0x28] sm:$0xff]
    %v37 = vld [vmem:[%s1 + $0x30] sm:$0xff]
    %v38 = vld [vmem:[%s1 + $0x38] sm:$0xff]
    %v39 = vld [vmem:[%s1 + $0x40] sm:$0xff]
    %v40 = vld [vmem:[%s1 + $0x48] sm:$0xff]
    %v41 = vld [vmem:[%s1 + $0x50] sm:$0xff]
    %v42 = vld [vmem:[%s1 + $0x58] sm:$0xff]
    %v43 = vld [vmem:[%s1 + $0x60] sm:$0xff]
    %v44 = vld [vmem:[%s1 + $0x68] sm:$0xff]
    %v45 = vld [vmem:[%s1 + $0x70] sm:$0xff]
    %v46 = vld [vmem:[%s1 + $0x78] sm:$0xff]
    %vm47 = vcmask 261120
    %v49 = vsel %vm47, %v15, 0
    %v52 = vsel %vm47, %v16, 0
    %v55 = vsel %vm47, %v17, 0
    %v58 = vsel %vm47, %v18, 0
    %v61 = vsel %vm47, %v19, 0
    %v64 = vsel %vm47, %v20, 0
    %v67 = vsel %vm47, %v21, 0
    %v70 = vsel %vm47, %v22, 0
    %v73 = vsel %vm47, %v23, 0
    %v76 = vsel %vm47, %v24, 0
    %v79 = vsel %vm47, %v25, 0
    %v82 = vsel %vm47, %v26, 0
    %v85 = vsel %vm47, %v27, 0
    %v88 = vsel %vm47, %v28, 0
    %v91 = vsel %vm47, %v29, 0
    %v94 = vsel %vm47, %v30, 0
    %v97 = vsel %vm47, %v31, 0
    %v100 = vsel %vm47, %v32, 0
    %v103 = vsel %vm47, %v33, 0
    %v106 = vsel %vm47, %v34, 0
    %v109 = vsel %vm47, %v35, 0
    %v112 = vsel %vm47, %v36, 0
    %v115 = vsel %vm47, %v37, 0
    %v118 = vsel %vm47, %v38, 0
    %v121 = vsel %vm47, %v39, 0
    %v124 = vsel %vm47, %v40, 0
    %v127 = vsel %vm47, %v41, 0
    %v130 = vsel %vm47, %v42, 0
    %v133 = vsel %vm47, %v43, 0
    %v136 = vsel %vm47, %v44, 0
    %v139 = vsel %vm47, %v45, 0
    %v142 = vsel %vm47, %v46, 0
    %144 = vmatprep.subr.mxu0 0.0
    %v145 = vand.u32 %v97, 4294901760
    %146 = vmatpush1.xpose.msra.mxu0 %v145
    %147 = vmatprep.subr.mxu0 0.0
    %v148 = vand.u32 %v100, 4294901760
    %149 = vmatpush1.xpose.msra.mxu0 %v148
    %150 = vmatprep.subr.mxu0 0.0
    %v151 = vand.u32 %v103, 4294901760
    %152 = vmatpush1.xpose.msra.mxu0 %v151
    %153 = vmatprep.subr.mxu0 0.0
    %v154 = vand.u32 %v106, 4294901760
    %155 = vmatpush1.xpose.msra.mxu0 %v154
    %156 = vmatprep.subr.mxu0 0.0
    %v157 = vand.u32 %v109, 4294901760
    %158 = vmatpush1.xpose.msra.mxu0 %v157
    %159 = vmatprep.subr.mxu0 0.0
    %v160 = vand.u32 %v112, 4294901760
    %161 = vmatpush1.xpose.msra.mxu0 %v160
    %162 = vmatprep.subr.mxu0 0.0
    %v163 = vand.u32 %v115, 4294901760
    %164 = vmatpush1.xpose.msra.mxu0 %v163
    %165 = vmatprep.subr.mxu0 0.0
    %v166 = vand.u32 %v118, 4294901760
    %167 = vmatpush1.xpose.msra.mxu0 %v166
    %168 = vmatprep.subr.mxu0 0.0
    %v169 = vand.u32 %v121, 4294901760
    %170 = vmatpush1.xpose.msra.mxu0 %v169
    %171 = vmatprep.subr.mxu0 0.0
    %v172 = vand.u32 %v124, 4294901760
    %173 = vmatpush1.xpose.msra.mxu0 %v172
    %174 = vmatprep.subr.mxu0 0.0
    %v175 = vand.u32 %v127, 4294901760
    %176 = vmatpush1.xpose.msra.mxu0 %v175
    %177 = vmatprep.subr.mxu0 0.0
    %v178 = vand.u32 %v130, 4294901760
    %179 = vmatpush1.xpose.msra.mxu0 %v178
    %180 = vmatprep.subr.mxu0 0.0
    %v181 = vand.u32 %v133, 4294901760
    %182 = vmatpush1.xpose.msra.mxu0 %v181
    %183 = vmatprep.subr.mxu0 0.0
    %v184 = vand.u32 %v136, 4294901760
    %185 = vmatpush1.xpose.msra.mxu0 %v184
    %186 = vmatprep.subr.mxu0 0.0
    %v187 = vand.u32 %v139, 4294901760
    %188 = vmatpush1.xpose.msra.mxu0 %v187
    %189 = vmatprep.subr.mxu0 0.0
    %v190 = vand.u32 %v142, 4294901760
    %191 = vmatpush1.xpose.msra.mxu0 %v190
    %192 = vmatprep.subr.mxu0 0.0
    %193 = vmatpush1.xpose.msra.mxu0 0.0
    %194 = vmatprep.subr.mxu0 0.0
    %195 = vmatpush1.xpose.msra.mxu0 0.0
    %196 = vmatprep.subr.mxu0 0.0
    %197 = vmatpush1.xpose.msra.mxu0 0.0
    %198 = vmatprep.subr.mxu0 0.0
    %199 = vmatpush1.xpose.msra.mxu0 0.0
    %200 = vmatprep.subr.mxu0 0.0
    %201 = vmatpush1.xpose.msra.mxu0 0.0
    %202 = vmatprep.subr.mxu0 0.0
    %203 = vmatpush1.xpose.msra.mxu0 0.0
    %204 = vmatprep.subr.mxu0 0.0
    %205 = vmatpush1.xpose.msra.mxu0 0.0
    %206 = vmatprep.subr.mxu0 0.0
    %207 = vmatpush1.xpose.msra.mxu0 0.0
    %208 = vmatprep.subr.mxu0 0.0
    %209 = vmatpush1.xpose.msra.mxu0 0.0
    %210 = vmatprep.subr.mxu0 0.0
    %211 = vmatpush1.xpose.msra.mxu0 0.0
    %212 = vmatprep.subr.mxu0 0.0
    %213 = vmatpush1.xpose.msra.mxu0 0.0
    %214 = vmatprep.subr.mxu0 0.0
    %215 = vmatpush1.xpose.msra.mxu0 0.0
    %216 = vmatprep.subr.mxu0 0.0
    %217 = vmatpush1.xpose.msra.mxu0 0.0
    %218 = vmatprep.subr.mxu0 0.0
    %219 = vmatpush1.xpose.msra.mxu0 0.0
    %220 = vmatprep.subr.mxu0 0.0
    %221 = vmatpush1.xpose.msra.mxu0 0.0
    %222 = vmatprep.subr.mxu0 0.0
    %223 = vmatpush1.xpose.msra.mxu0 0.0
    %224 = vmatprep.mubr.f32.mxu0 0.0
    %v225 = vand.u32 %v49, 4294901760
    %v226 = vsub.f32 %v49, %v225
    %v227 = vand.u32 %v226, 4294901760
    %v228 = vsub.f32 %v226, %v227
    %v229 = vand.u32 %v228, 4294901760
    %230 = vmatmul.mubr.f32.gmra.mrb[0].mxu0 %v229
    %v231 = vpop.f32.mrb[0].mxu0
    %v232 = vadd.f32 0.0, %v231
    %v233 = vpop.f32.mrb[0].mxu0
    %234 = vmatprep.mubr.f32.mxu0 0.0
    %v235 = vand.u32 %v52, 4294901760
    %v236 = vsub.f32 %v52, %v235
    %v237 = vand.u32 %v236, 4294901760
    %v238 = vsub.f32 %v236, %v237
    %v239 = vand.u32 %v238, 4294901760
    %240 = vmatmul.mubr.f32.gmra.mrb[0].mxu0 %v239
    %v241 = vpop.f32.mrb[0].mxu0
    %v242 = vadd.f32 0.0, %v241
    %v243 = vpop.f32.mrb[0].mxu0
    %244 = vmatprep.mubr.f32.mxu0 0.0
    %v245 = vand.u32 %v55, 4294901760
    %v246 = vsub.f32 %v55, %v245
    %v247 = vand.u32 %v246, 4294901760
    %v248 = vsub.f32 %v246, %v247
    %v249 = vand.u32 %v248, 4294901760
    %250 = vmatmul.mubr.f32.gmra.mrb[0].mxu0 %v249
    %v251 = vpop.f32.mrb[0].mxu0
    %v252 = vadd.f32 0.0, %v251
    %v253 = vpop.f32.mrb[0].mxu0
    %254 = vmatprep.mubr.f32.mxu0 0.0
    %v255 = vand.u32 %v58, 4294901760
    %v256 = vsub.f32 %v58, %v255
    %v257 = vand.u32 %v256, 4294901760
    %v258 = vsub.f32 %v256, %v257
    %v259 = vand.u32 %v258, 4294901760
    %260 = vmatmul.mubr.f32.gmra.mrb[0].mxu0 %v259
    %v261 = vpop.f32.mrb[0].mxu0
    %v262 = vadd.f32 0.0, %v261
    %v263 = vpop.f32.mrb[0].mxu0
    %264 = vmatprep.mubr.f32.mxu0 0.0
    %v265 = vand.u32 %v61, 4294901760
    %v266 = vsub.f32 %v61, %v265
    %v267 = vand.u32 %v266, 4294901760
    %v268 = vsub.f32 %v266, %v267
    %v269 = vand.u32 %v268, 4294901760
    %270 = vmatmul.mubr.f32.gmra.mrb[0].mxu0 %v269
    %v271 = vpop.f32.mrb[0].mxu0
    %v272 = vadd.f32 0.0, %v271
    %v273 = vpop.f32.mrb[0].mxu0
    %274 = vmatprep.mubr.f32.mxu0 0.0
    %v275 = vand.u32 %v64, 4294901760
    %v276 = vsub.f32 %v64, %v275
    %v277 = vand.u32 %v276, 4294901760
    %v278 = vsub.f32 %v276, %v277
    %v279 = vand.u32 %v278, 4294901760
    %280 = vmatmul.mubr.f32.gmra.mrb[0].mxu0 %v279
    %v281 = vpop.f32.mrb[0].mxu0
    %v282 = vadd.f32 0.0, %v281
    %v283 = vpop.f32.mrb[0].mxu0
    %284 = vmatprep.mubr.f32.mxu0 0.0
    %v285 = vand.u32 %v67, 4294901760
    %v286 = vsub.f32 %v67, %v285
    %v287 = vand.u32 %v286, 4294901760
    %v288 = vsub.f32 %v286, %v287
    %v289 = vand.u32 %v288, 4294901760
    %290 = vmatmul.mubr.f32.gmra.mrb[0].mxu0 %v289
    %v291 = vpop.f32.mrb[0].mxu0
    %v292 = vadd.f32 0.0, %v291
    %v293 = vpop.f32.mrb[0].mxu0
    %294 = vmatprep.mubr.f32.mxu0 0.0
    %v295 = vand.u32 %v70, 4294901760
    %v296 = vsub.f32 %v70, %v295
    %v297 = vand.u32 %v296, 4294901760
    %v298 = vsub.f32 %v296, %v297
    %v299 = vand.u32 %v298, 4294901760
    %300 = vmatmul.mubr.f32.gmra.mrb[0].mxu0 %v299
    %v301 = vpop.f32.mrb[0].mxu0
    %v302 = vadd.f32 0.0, %v301
    %v303 = vpop.f32.mrb[0].mxu0
    %304 = vmatprep.mubr.f32.mxu0 0.0
    %v305 = vand.u32 %v73, 4294901760
    %v306 = vsub.f32 %v73, %v305
    %v307 = vand.u32 %v306, 4294901760
    %v308 = vsub.f32 %v306, %v307
    %v309 = vand.u32 %v308, 4294901760
    %310 = vmatmul.mubr.f32.gmra.mrb[0].mxu0 %v309
    %v311 = vpop.f32.mrb[0].mxu0
    %v312 = vadd.f32 0.0, %v311
    %v313 = vpop.f32.mrb[0].mxu0
    %314 = vmatprep.mubr.f32.mxu0 0.0
    %v315 = vand.u32 %v76, 4294901760
    %v316 = vsub.f32 %v76, %v315
    %v317 = vand.u32 %v316, 4294901760
    %v318 = vsub.f32 %v316, %v317
    %v319 = vand.u32 %v318, 4294901760
    %320 = vmatmul.mubr.f32.gmra.mrb[0].mxu0 %v319
    %v321 = vpop.f32.mrb[0].mxu0
    %v322 = vadd.f32 0.0, %v321
    %v323 = vpop.f32.mrb[0].mxu0
    %324 = vmatprep.mubr.f32.mxu0 0.0
    %v325 = vand.u32 %v79, 4294901760
    %v326 = vsub.f32 %v79, %v325
    %v327 = vand.u32 %v326, 4294901760
    %v328 = vsub.f32 %v326, %v327
    %v329 = vand.u32 %v328, 4294901760
    %330 = vmatmul.mubr.f32.gmra.mrb[0].mxu0 %v329
    %v331 = vpop.f32.mrb[0].mxu0
    %v332 = vadd.f32 0.0, %v331
    %v333 = vpop.f32.mrb[0].mxu0
    %334 = vmatprep.mubr.f32.mxu0 0.0
    %v335 = vand.u32 %v82, 4294901760
    %v336 = vsub.f32 %v82, %v335
    %v337 = vand.u32 %v336, 4294901760
    %v338 = vsub.f32 %v336, %v337
    %v339 = vand.u32 %v338, 4294901760
    %340 = vmatmul.mubr.f32.gmra.mrb[0].mxu0 %v339
    %v341 = vpop.f32.mrb[0].mxu0
    %v342 = vadd.f32 0.0, %v341
    %v343 = vpop.f32.mrb[0].mxu0
    %344 = vmatprep.mubr.f32.mxu0 0.0
    %v345 = vand.u32 %v85, 4294901760
    %v346 = vsub.f32 %v85, %v345
    %v347 = vand.u32 %v346, 4294901760
    %v348 = vsub.f32 %v346, %v347
    %v349 = vand.u32 %v348, 4294901760
    %350 = vmatmul.mubr.f32.gmra.mrb[0].mxu0 %v349
    %v351 = vpop.f32.mrb[0].mxu0
    %v352 = vadd.f32 0.0, %v351
    %v353 = vpop.f32.mrb[0].mxu0
    %354 = vmatprep.mubr.f32.mxu0 0.0
    %v355 = vand.u32 %v88, 4294901760
    %v356 = vsub.f32 %v88, %v355
    %v357 = vand.u32 %v356, 4294901760
    %v358 = vsub.f32 %v356, %v357
    %v359 = vand.u32 %v358, 4294901760
    %360 = vmatmul.mubr.f32.gmra.mrb[0].mxu0 %v359
    %v361 = vpop.f32.mrb[0].mxu0
    %v362 = vadd.f32 0.0, %v361
    %v363 = vpop.f32.mrb[0].mxu0
    %364 = vmatprep.mubr.f32.mxu0 0.0
    %v365 = vand.u32 %v91, 4294901760
    %v366 = vsub.f32 %v91, %v365
    %v367 = vand.u32 %v366, 4294901760
    %v368 = vsub.f32 %v366, %v367
    %v369 = vand.u32 %v368, 4294901760
    %370 = vmatmul.mubr.f32.gmra.mrb[0].mxu0 %v369
    %v371 = vpop.f32.mrb[0].mxu0
    %v372 = vadd.f32 0.0, %v371
    %v373 = vpop.f32.mrb[0].mxu0
    %374 = vmatprep.mubr.f32.mxu0 0.0
    %v375 = vand.u32 %v94, 4294901760
    %v376 = vsub.f32 %v94, %v375
    %v377 = vand.u32 %v376, 4294901760
    %v378 = vsub.f32 %v376, %v377
    %v379 = vand.u32 %v378, 4294901760
    %380 = vmatmul.mubr.f32.gmra.mrb[0].mxu0 %v379
    %v381 = vpop.f32.mrb[0].mxu0
    %v382 = vadd.f32 0.0, %v381
    %v383 = vpop.f32.mrb[0].mxu0
    %384 = vdwg.mxu0
    %385 = vmatprep.subr.mxu0 0.0
    %v386 = vand.u32 %v97, 4294901760
    %v387 = vsub.f32 %v97, %v386
    %v388 = vand.u32 %v387, 4294901760
    %v389 = vsub.f32 %v387, %v388
    %v390 = vand.u32 %v389, 4294901760
    %391 = vmatpush1.xpose.msra.mxu0 %v390
    %392 = vmatprep.subr.mxu0 0.0
    %v393 = vand.u32 %v100, 4294901760
    %v394 = vsub.f32 %v100, %v393
    %v395 = vand.u32 %v394, 4294901760
    %v396 = vsub.f32 %v394, %v395
    %v397 = vand.u32 %v396, 4294901760
    %398 = vmatpush1.xpose.msra.mxu0 %v397
    %399 = vmatprep.subr.mxu0 0.0
    %v400 = vand.u32 %v103, 4294901760
    %v401 = vsub.f32 %v103, %v400
    %v402 = vand.u32 %v401, 4294901760
    %v403 = vsub.f32 %v401, %v402
    %v404 = vand.u32 %v403, 4294901760
    %405 = vmatpush1.xpose.msra.mxu0 %v404
    %406 = vmatprep.subr.mxu0 0.0
    %v407 = vand.u32 %v106, 4294901760
    %v408 = vsub.f32 %v106, %v407
    %v409 = vand.u32 %v408, 4294901760
    %v410 = vsub.f32 %v408, %v409
    %v411 = vand.u32 %v410, 4294901760
    %412 = vmatpush1.xpose.msra.mxu0 %v411
    %413 = vmatprep.subr.mxu0 0.0
    %v414 = vand.u32 %v109, 4294901760
    %v415 = vsub.f32 %v109, %v414
    %v416 = vand.u32 %v415, 4294901760
    %v417 = vsub.f32 %v415, %v416
    %v418 = vand.u32 %v417, 4294901760
    %419 = vmatpush1.xpose.msra.mxu0 %v418
    %420 = vmatprep.subr.mxu0 0.0
    %v421 = vand.u32 %v112, 4294901760
    %v422 = vsub.f32 %v112, %v421
    %v423 = vand.u32 %v422, 4294901760
    %v424 = vsub.f32 %v422, %v423
    %v425 = vand.u32 %v424, 4294901760
    %426 = vmatpush1.xpose.msra.mxu0 %v425
    %427 = vmatprep.subr.mxu0 0.0
    %v428 = vand.u32 %v115, 4294901760
    %v429 = vsub.f32 %v115, %v428
    %v430 = vand.u32 %v429, 4294901760
    %v431 = vsub.f32 %v429, %v430
    %v432 = vand.u32 %v431, 4294901760
    %433 = vmatpush1.xpose.msra.mxu0 %v432
    %434 = vmatprep.subr.mxu0 0.0
    %v435 = vand.u32 %v118, 4294901760
    %v436 = vsub.f32 %v118, %v435
    %v437 = vand.u32 %v436, 4294901760
    %v438 = vsub.f32 %v436, %v437
    %v439 = vand.u32 %v438, 4294901760
    %440 = vmatpush1.xpose.msra.mxu0 %v439
    %441 = vmatprep.subr.mxu0 0.0
    %v442 = vand.u32 %v121, 4294901760
    %v443 = vsub.f32 %v121, %v442
    %v444 = vand.u32 %v443, 4294901760
    %v445 = vsub.f32 %v443, %v444
    %v446 = vand.u32 %v445, 4294901760
    %447 = vmatpush1.xpose.msra.mxu0 %v446
    %448 = vmatprep.subr.mxu0 0.0
    %v449 = vand.u32 %v124, 4294901760
    %v450 = vsub.f32 %v124, %v449
    %v451 = vand.u32 %v450, 4294901760
    %v452 = vsub.f32 %v450, %v451
    %v453 = vand.u32 %v452, 4294901760
    %454 = vmatpush1.xpose.msra.mxu0 %v453
    %455 = vmatprep.subr.mxu0 0.0
    %v456 = vand.u32 %v127, 4294901760
    %v457 = vsub.f32 %v127, %v456
    %v458 = vand.u32 %v457, 4294901760
    %v459 = vsub.f32 %v457, %v458
    %v460 = vand.u32 %v459, 4294901760
    %461 = vmatpush1.xpose.msra.mxu0 %v460
    %462 = vmatprep.subr.mxu0 0.0
    %v463 = vand.u32 %v130, 4294901760
    %v464 = vsub.f32 %v130, %v463
    %v465 = vand.u32 %v464, 4294901760
    %v466 = vsub.f32 %v464, %v465
    %v467 = vand.u32 %v466, 4294901760
    %468 = vmatpush1.xpose.msra.mxu0 %v467
    %469 = vmatprep.subr.mxu0 0.0
    %v470 = vand.u32 %v133, 4294901760
    %v471 = vsub.f32 %v133, %v470
    %v472 = vand.u32 %v471, 4294901760
    %v473 = vsub.f32 %v471, %v472
    %v474 = vand.u32 %v473, 4294901760
    %475 = vmatpush1.xpose.msra.mxu0 %v474
    %476 = vmatprep.subr.mxu0 0.0
    %v477 = vand.u32 %v136, 4294901760
    %v478 = vsub.f32 %v136, %v477
    %v479 = vand.u32 %v478, 4294901760
    %v480 = vsub.f32 %v478, %v479
    %v481 = vand.u32 %v480, 4294901760
    %482 = vmatpush1.xpose.msra.mxu0 %v481
    %483 = vmatprep.subr.mxu0 0.0
    %v484 = vand.u32 %v139, 4294901760
    %v485 = vsub.f32 %v139, %v484
    %v486 = vand.u32 %v485, 4294901760
    %v487 = vsub.f32 %v485, %v486
    %v488 = vand.u32 %v487, 4294901760
    %489 = vmatpush1.xpose.msra.mxu0 %v488
    %490 = vmatprep.subr.mxu0 0.0
    %v491 = vand.u32 %v142, 4294901760
    %v492 = vsub.f32 %v142, %v491
    %v493 = vand.u32 %v492, 4294901760
    %v494 = vsub.f32 %v492, %v493
    %v495 = vand.u32 %v494, 4294901760
    %496 = vmatpush1.xpose.msra.mxu0 %v495
    %497 = vmatprep.subr.mxu0 0.0
    %498 = vmatpush1.xpose.msra.mxu0 0.0
    %499 = vmatprep.subr.mxu0 0.0
    %500 = vmatpush1.xpose.msra.mxu0 0.0
    %501 = vmatprep.subr.mxu0 0.0
    %502 = vmatpush1.xpose.msra.mxu0 0.0
    %503 = vmatprep.subr.mxu0 0.0
    %504 = vmatpush1.xpose.msra.mxu0 0.0
    %505 = vmatprep.subr.mxu0 0.0
    %506 = vmatpush1.xpose.msra.mxu0 0.0
    %507 = vmatprep.subr.mxu0 0.0
    %508 = vmatpush1.xpose.msra.mxu0 0.0
    %509 = vmatprep.subr.mxu0 0.0
    %510 = vmatpush1.xpose.msra.mxu0 0.0
    %511 = vmatprep.subr.mxu0 0.0
    %512 = vmatpush1.xpose.msra.mxu0 0.0
    %513 = vmatprep.subr.mxu0 0.0
    %514 = vmatpush1.xpose.msra.mxu0 0.0
    %515 = vmatprep.subr.mxu0 0.0
    %516 = vmatpush1.xpose.msra.mxu0 0.0
    %517 = vmatprep.subr.mxu0 0.0
    %518 = vmatpush1.xpose.msra.mxu0 0.0
    %519 = vmatprep.subr.mxu0 0.0
    %520 = vmatpush1.xpose.msra.mxu0 0.0
    %521 = vmatprep.subr.mxu0 0.0
    %522 = vmatpush1.xpose.msra.mxu0 0.0
    %523 = vmatprep.subr.mxu0 0.0
    %524 = vmatpush1.xpose.msra.mxu0 0.0
    %525 = vmatprep.subr.mxu0 0.0
    %526 = vmatpush1.xpose.msra.mxu0 0.0
    %527 = vmatprep.subr.mxu0 0.0
    %528 = vmatpush1.xpose.msra.mxu0 0.0
    %529 = vmatprep.mubr.f32.mxu0 0.0
    %v530 = vand.u32 %v49, 4294901760
    %531 = vmatmul.mubr.f32.gmra.mrb[0].mxu0 %v530
    %v532 = vpop.f32.mrb[0].mxu0
    %v533 = vadd.f32 %v232, %v532
    %v534 = vpop.f32.mrb[0].mxu0
    %535 = vmatprep.mubr.f32.mxu0 0.0
    %v536 = vand.u32 %v52, 4294901760
    %537 = vmatmul.mubr.f32.gmra.mrb[0].mxu0 %v536
    %v538 = vpop.f32.mrb[0].mxu0
    %v539 = vadd.f32 %v242, %v538
    %v540 = vpop.f32.mrb[0].mxu0
    %541 = vmatprep.mubr.f32.mxu0 0.0
    %v542 = vand.u32 %v55, 4294901760
    %543 = vmatmul.mubr.f32.gmra.mrb[0].mxu0 %v542
    %v544 = vpop.f32.mrb[0].mxu0
    %v545 = vadd.f32 %v252, %v544
    %v546 = vpop.f32.mrb[0].mxu0
    %547 = vmatprep.mubr.f32.mxu0 0.0
    %v548 = vand.u32 %v58, 4294901760
    %549 = vmatmul.mubr.f32.gmra.mrb[0].mxu0 %v548
    %v550 = vpop.f32.mrb[0].mxu0
    %v551 = vadd.f32 %v262, %v550
    %v552 = vpop.f32.mrb[0].mxu0
    %553 = vmatprep.mubr.f32.mxu0 0.0
    %v554 = vand.u32 %v61, 4294901760
    %555 = vmatmul.mubr.f32.gmra.mrb[0].mxu0 %v554
    %v556 = vpop.f32.mrb[0].mxu0
    %v557 = vadd.f32 %v272, %v556
    %v558 = vpop.f32.mrb[0].mxu0
    %559 = vmatprep.mubr.f32.mxu0 0.0
    %v560 = vand.u32 %v64, 4294901760
    %561 = vmatmul.mubr.f32.gmra.mrb[0].mxu0 %v560
    %v562 = vpop.f32.mrb[0].mxu0
    %v563 = vadd.f32 %v282, %v562
    %v564 = vpop.f32.mrb[0].mxu0
    %565 = vmatprep.mubr.f32.mxu0 0.0
    %v566 = vand.u32 %v67, 4294901760
    %567 = vmatmul.mubr.f32.gmra.mrb[0].mxu0 %v566
    %v568 = vpop.f32.mrb[0].mxu0
    %v569 = vadd.f32 %v292, %v568
    %v570 = vpop.f32.mrb[0].mxu0
    %571 = vmatprep.mubr.f32.mxu0 0.0
    %v572 = vand.u32 %v70, 4294901760
    %573 = vmatmul.mubr.f32.gmra.mrb[0].mxu0 %v572
    %v574 = vpop.f32.mrb[0].mxu0
    %v575 = vadd.f32 %v302, %v574
    %v576 = vpop.f32.mrb[0].mxu0
    %577 = vmatprep.mubr.f32.mxu0 0.0
    %v578 = vand.u32 %v73, 4294901760
    %579 = vmatmul.mubr.f32.gmra.mrb[0].mxu0 %v578
    %v580 = vpop.f32.mrb[0].mxu0
    %v581 = vadd.f32 %v312, %v580
    %v582 = vpop.f32.mrb[0].mxu0
    %583 = vmatprep.mubr.f32.mxu0 0.0
    %v584 = vand.u32 %v76, 4294901760
    %585 = vmatmul.mubr.f32.gmra.mrb[0].mxu0 %v584
    %v586 = vpop.f32.mrb[0].mxu0
    %v587 = vadd.f32 %v322, %v586
    %v588 = vpop.f32.mrb[0].mxu0
    %589 = vmatprep.mubr.f32.mxu0 0.0
    %v590 = vand.u32 %v79, 4294901760
    %591 = vmatmul.mubr.f32.gmra.mrb[0].mxu0 %v590
    %v592 = vpop.f32.mrb[0].mxu0
    %v593 = vadd.f32 %v332, %v592
    %v594 = vpop.f32.mrb[0].mxu0
    %595 = vmatprep.mubr.f32.mxu0 0.0
    %v596 = vand.u32 %v82, 4294901760
    %597 = vmatmul.mubr.f32.gmra.mrb[0].mxu0 %v596
    %v598 = vpop.f32.mrb[0].mxu0
    %v599 = vadd.f32 %v342, %v598
    %v600 = vpop.f32.mrb[0].mxu0
    %601 = vmatprep.mubr.f32.mxu0 0.0
    %v602 = vand.u32 %v85, 4294901760
    %603 = vmatmul.mubr.f32.gmra.mrb[0].mxu0 %v602
    %v604 = vpop.f32.mrb[0].mxu0
    %v605 = vadd.f32 %v352, %v604
    %v606 = vpop.f32.mrb[0].mxu0
    %607 = vmatprep.mubr.f32.mxu0 0.0
    %v608 = vand.u32 %v88, 4294901760
    %609 = vmatmul.mubr.f32.gmra.mrb[0].mxu0 %v608
    %v610 = vpop.f32.mrb[0].mxu0
    %v611 = vadd.f32 %v362, %v610
    %v612 = vpop.f32.mrb[0].mxu0
    %613 = vmatprep.mubr.f32.mxu0 0.0
    %v614 = vand.u32 %v91, 4294901760
    %615 = vmatmul.mubr.f32.gmra.mrb[0].mxu0 %v614
    %v616 = vpop.f32.mrb[0].mxu0
    %v617 = vadd.f32 %v372, %v616
    %v618 = vpop.f32.mrb[0].mxu0
    %619 = vmatprep.mubr.f32.mxu0 0.0
    %v620 = vand.u32 %v94, 4294901760
    %621 = vmatmul.mubr.f32.gmra.mrb[0].mxu0 %v620
    %v622 = vpop.f32.mrb[0].mxu0
    %v623 = vadd.f32 %v382, %v622
    %v624 = vpop.f32.mrb[0].mxu0
    %625 = vdwg.mxu0
    %626 = vmatprep.subr.mxu0 0.0
    %v627 = vand.u32 %v97, 4294901760
    %v628 = vsub.f32 %v97, %v627
    %629 = vmatpush1.xpose.msra.mxu0 %v628
    %630 = vmatprep.subr.mxu0 0.0
    %v631 = vand.u32 %v100, 4294901760
    %v632 = vsub.f32 %v100, %v631
    %633 = vmatpush1.xpose.msra.mxu0 %v632
    %634 = vmatprep.subr.mxu0 0.0
    %v635 = vand.u32 %v103, 4294901760
    %v636 = vsub.f32 %v103, %v635
    %637 = vmatpush1.xpose.msra.mxu0 %v636
    %638 = vmatprep.subr.mxu0 0.0
    %v639 = vand.u32 %v106, 4294901760
    %v640 = vsub.f32 %v106, %v639
    %641 = vmatpush1.xpose.msra.mxu0 %v640
    %642 = vmatprep.subr.mxu0 0.0
    %v643 = vand.u32 %v109, 4294901760
    %v644 = vsub.f32 %v109, %v643
    %645 = vmatpush1.xpose.msra.mxu0 %v644
    %646 = vmatprep.subr.mxu0 0.0
    %v647 = vand.u32 %v112, 4294901760
    %v648 = vsub.f32 %v112, %v647
    %649 = vmatpush1.xpose.msra.mxu0 %v648
    %650 = vmatprep.subr.mxu0 0.0
    %v651 = vand.u32 %v115, 4294901760
    %v652 = vsub.f32 %v115, %v651
    %653 = vmatpush1.xpose.msra.mxu0 %v652
    %654 = vmatprep.subr.mxu0 0.0
    %v655 = vand.u32 %v118, 4294901760
    %v656 = vsub.f32 %v118, %v655
    %657 = vmatpush1.xpose.msra.mxu0 %v656
    %658 = vmatprep.subr.mxu0 0.0
    %v659 = vand.u32 %v121, 4294901760
    %v660 = vsub.f32 %v121, %v659
    %661 = vmatpush1.xpose.msra.mxu0 %v660
    %662 = vmatprep.subr.mxu0 0.0
    %v663 = vand.u32 %v124, 4294901760
    %v664 = vsub.f32 %v124, %v663
    %665 = vmatpush1.xpose.msra.mxu0 %v664
    %666 = vmatprep.subr.mxu0 0.0
    %v667 = vand.u32 %v127, 4294901760
    %v668 = vsub.f32 %v127, %v667
    %669 = vmatpush1.xpose.msra.mxu0 %v668
    %670 = vmatprep.subr.mxu0 0.0
    %v671 = vand.u32 %v130, 4294901760
    %v672 = vsub.f32 %v130, %v671
    %673 = vmatpush1.xpose.msra.mxu0 %v672
    %674 = vmatprep.subr.mxu0 0.0
    %v675 = vand.u32 %v133, 4294901760
    %v676 = vsub.f32 %v133, %v675
    %677 = vmatpush1.xpose.msra.mxu0 %v676
    %678 = vmatprep.subr.mxu0 0.0
    %v679 = vand.u32 %v136, 4294901760
    %v680 = vsub.f32 %v136, %v679
    %681 = vmatpush1.xpose.msra.mxu0 %v680
    %682 = vmatprep.subr.mxu0 0.0
    %v683 = vand.u32 %v139, 4294901760
    %v684 = vsub.f32 %v139, %v683
    %685 = vmatpush1.xpose.msra.mxu0 %v684
    %686 = vmatprep.subr.mxu0 0.0
    %v687 = vand.u32 %v142, 4294901760
    %v688 = vsub.f32 %v142, %v687
    %689 = vmatpush1.xpose.msra.mxu0 %v688
    %690 = vmatprep.subr.mxu0 0.0
    %691 = vmatpush1.xpose.msra.mxu0 0.0
    %692 = vmatprep.subr.mxu0 0.0
    %693 = vmatpush1.xpose.msra.mxu0 0.0
    %694 = vmatprep.subr.mxu0 0.0
    %695 = vmatpush1.xpose.msra.mxu0 0.0
    %696 = vmatprep.subr.mxu0 0.0
    %697 = vmatpush1.xpose.msra.mxu0 0.0
    %698 = vmatprep.subr.mxu0 0.0
    %699 = vmatpush1.xpose.msra.mxu0 0.0
    %700 = vmatprep.subr.mxu0 0.0
    %701 = vmatpush1.xpose.msra.mxu0 0.0
    %702 = vmatprep.subr.mxu0 0.0
    %703 = vmatpush1.xpose.msra.mxu0 0.0
    %704 = vmatprep.subr.mxu0 0.0
    %705 = vmatpush1.xpose.msra.mxu0 0.0
    %706 = vmatprep.subr.mxu0 0.0
    %707 = vmatpush1.xpose.msra.mxu0 0.0
    %708 = vmatprep.subr.mxu0 0.0
    %709 = vmatpush1.xpose.msra.mxu0 0.0
    %710 = vmatprep.subr.mxu0 0.0
    %711 = vmatpush1.xpose.msra.mxu0 0.0
    %712 = vmatprep.subr.mxu0 0.0
    %713 = vmatpush1.xpose.msra.mxu0 0.0
    %714 = vmatprep.subr.mxu0 0.0
    %715 = vmatpush1.xpose.msra.mxu0 0.0
    %716 = vmatprep.subr.mxu0 0.0
    %717 = vmatpush1.xpose.msra.mxu0 0.0
    %718 = vmatprep.subr.mxu0 0.0
    %719 = vmatpush1.xpose.msra.mxu0 0.0
    %720 = vmatprep.subr.mxu0 0.0
    %721 = vmatpush1.xpose.msra.mxu0 0.0
    %722 = vmatprep.mubr.f32.mxu0 0.0
    %v723 = vand.u32 %v49, 4294901760
    %v724 = vsub.f32 %v49, %v723
    %725 = vmatmul.mubr.f32.gmra.mrb[0].mxu0 %v724
    %v726 = vpop.f32.mrb[0].mxu0
    %v727 = vadd.f32 %v533, %v726
    %v728 = vpop.f32.mrb[0].mxu0
    %729 = vmatprep.mubr.f32.mxu0 0.0
    %v730 = vand.u32 %v52, 4294901760
    %v731 = vsub.f32 %v52, %v730
    %732 = vmatmul.mubr.f32.gmra.mrb[0].mxu0 %v731
    %v733 = vpop.f32.mrb[0].mxu0
    %v734 = vadd.f32 %v539, %v733
    %v735 = vpop.f32.mrb[0].mxu0
    %736 = vmatprep.mubr.f32.mxu0 0.0
    %v737 = vand.u32 %v55, 4294901760
    %v738 = vsub.f32 %v55, %v737
    %739 = vmatmul.mubr.f32.gmra.mrb[0].mxu0 %v738
    %v740 = vpop.f32.mrb[0].mxu0
    %v741 = vadd.f32 %v545, %v740
    %v742 = vpop.f32.mrb[0].mxu0
    %743 = vmatprep.mubr.f32.mxu0 0.0
    %v744 = vand.u32 %v58, 4294901760
    %v745 = vsub.f32 %v58, %v744
    %746 = vmatmul.mubr.f32.gmra.mrb[0].mxu0 %v745
    %v747 = vpop.f32.mrb[0].mxu0
    %v748 = vadd.f32 %v551, %v747
    %v749 = vpop.f32.mrb[0].mxu0
    %750 = vmatprep.mubr.f32.mxu0 0.0
    %v751 = vand.u32 %v61, 4294901760
    %v752 = vsub.f32 %v61, %v751
    %753 = vmatmul.mubr.f32.gmra.mrb[0].mxu0 %v752
    %v754 = vpop.f32.mrb[0].mxu0
    %v755 = vadd.f32 %v557, %v754
    %v756 = vpop.f32.mrb[0].mxu0
    %757 = vmatprep.mubr.f32.mxu0 0.0
    %v758 = vand.u32 %v64, 4294901760
    %v759 = vsub.f32 %v64, %v758
    %760 = vmatmul.mubr.f32.gmra.mrb[0].mxu0 %v759
    %v761 = vpop.f32.mrb[0].mxu0
    %v762 = vadd.f32 %v563, %v761
    %v763 = vpop.f32.mrb[0].mxu0
    %764 = vmatprep.mubr.f32.mxu0 0.0
    %v765 = vand.u32 %v67, 4294901760
    %v766 = vsub.f32 %v67, %v765
    %767 = vmatmul.mubr.f32.gmra.mrb[0].mxu0 %v766
    %v768 = vpop.f32.mrb[0].mxu0
    %v769 = vadd.f32 %v569, %v768
    %v770 = vpop.f32.mrb[0].mxu0
    %771 = vmatprep.mubr.f32.mxu0 0.0
    %v772 = vand.u32 %v70, 4294901760
    %v773 = vsub.f32 %v70, %v772
    %774 = vmatmul.mubr.f32.gmra.mrb[0].mxu0 %v773
    %v775 = vpop.f32.mrb[0].mxu0
    %v776 = vadd.f32 %v575, %v775
    %v777 = vpop.f32.mrb[0].mxu0
    %778 = vmatprep.mubr.f32.mxu0 0.0
    %v779 = vand.u32 %v73, 4294901760
    %v780 = vsub.f32 %v73, %v779
    %781 = vmatmul.mubr.f32.gmra.mrb[0].mxu0 %v780
    %v782 = vpop.f32.mrb[0].mxu0
    %v783 = vadd.f32 %v581, %v782
    %v784 = vpop.f32.mrb[0].mxu0
    %785 = vmatprep.mubr.f32.mxu0 0.0
    %v786 = vand.u32 %v76, 4294901760
    %v787 = vsub.f32 %v76, %v786
    %788 = vmatmul.mubr.f32.gmra.mrb[0].mxu0 %v787
    %v789 = vpop.f32.mrb[0].mxu0
    %v790 = vadd.f32 %v587, %v789
    %v791 = vpop.f32.mrb[0].mxu0
    %792 = vmatprep.mubr.f32.mxu0 0.0
    %v793 = vand.u32 %v79, 4294901760
    %v794 = vsub.f32 %v79, %v793
    %795 = vmatmul.mubr.f32.gmra.mrb[0].mxu0 %v794
    %v796 = vpop.f32.mrb[0].mxu0
    %v797 = vadd.f32 %v593, %v796
    %v798 = vpop.f32.mrb[0].mxu0
    %799 = vmatprep.mubr.f32.mxu0 0.0
    %v800 = vand.u32 %v82, 4294901760
    %v801 = vsub.f32 %v82, %v800
    %802 = vmatmul.mubr.f32.gmra.mrb[0].mxu0 %v801
    %v803 = vpop.f32.mrb[0].mxu0
    %v804 = vadd.f32 %v599, %v803
    %v805 = vpop.f32.mrb[0].mxu0
    %806 = vmatprep.mubr.f32.mxu0 0.0
    %v807 = vand.u32 %v85, 4294901760
    %v808 = vsub.f32 %v85, %v807
    %809 = vmatmul.mubr.f32.gmra.mrb[0].mxu0 %v808
    %v810 = vpop.f32.mrb[0].mxu0
    %v811 = vadd.f32 %v605, %v810
    %v812 = vpop.f32.mrb[0].mxu0
    %813 = vmatprep.mubr.f32.mxu0 0.0
    %v814 = vand.u32 %v88, 4294901760
    %v815 = vsub.f32 %v88, %v814
    %816 = vmatmul.mubr.f32.gmra.mrb[0].mxu0 %v815
    %v817 = vpop.f32.mrb[0].mxu0
    %v818 = vadd.f32 %v611, %v817
    %v819 = vpop.f32.mrb[0].mxu0
    %820 = vmatprep.mubr.f32.mxu0 0.0
    %v821 = vand.u32 %v91, 4294901760
    %v822 = vsub.f32 %v91, %v821
    %823 = vmatmul.mubr.f32.gmra.mrb[0].mxu0 %v822
    %v824 = vpop.f32.mrb[0].mxu0
    %v825 = vadd.f32 %v617, %v824
    %v826 = vpop.f32.mrb[0].mxu0
    %827 = vmatprep.mubr.f32.mxu0 0.0
    %v828 = vand.u32 %v94, 4294901760
    %v829 = vsub.f32 %v94, %v828
    %830 = vmatmul.mubr.f32.gmra.mrb[0].mxu0 %v829
    %v831 = vpop.f32.mrb[0].mxu0
    %v832 = vadd.f32 %v623, %v831
    %v833 = vpop.f32.mrb[0].mxu0
    %834 = vdwg.mxu0
    %835 = vmatprep.subr.mxu0 0.0
    %v836 = vand.u32 %v97, 4294901760
    %837 = vmatpush1.xpose.msra.mxu0 %v836
    %838 = vmatprep.subr.mxu0 0.0
    %v839 = vand.u32 %v100, 4294901760
    %840 = vmatpush1.xpose.msra.mxu0 %v839
    %841 = vmatprep.subr.mxu0 0.0
    %v842 = vand.u32 %v103, 4294901760
    %843 = vmatpush1.xpose.msra.mxu0 %v842
    %844 = vmatprep.subr.mxu0 0.0
    %v845 = vand.u32 %v106, 4294901760
    %846 = vmatpush1.xpose.msra.mxu0 %v845
    %847 = vmatprep.subr.mxu0 0.0
    %v848 = vand.u32 %v109, 4294901760
    %849 = vmatpush1.xpose.msra.mxu0 %v848
    %850 = vmatprep.subr.mxu0 0.0
    %v851 = vand.u32 %v112, 4294901760
    %852 = vmatpush1.xpose.msra.mxu0 %v851
    %853 = vmatprep.subr.mxu0 0.0
    %v854 = vand.u32 %v115, 4294901760
    %855 = vmatpush1.xpose.msra.mxu0 %v854
    %856 = vmatprep.subr.mxu0 0.0
    %v857 = vand.u32 %v118, 4294901760
    %858 = vmatpush1.xpose.msra.mxu0 %v857
    %859 = vmatprep.subr.mxu0 0.0
    %v860 = vand.u32 %v121, 4294901760
    %861 = vmatpush1.xpose.msra.mxu0 %v860
    %862 = vmatprep.subr.mxu0 0.0
    %v863 = vand.u32 %v124, 4294901760
    %864 = vmatpush1.xpose.msra.mxu0 %v863
    %865 = vmatprep.subr.mxu0 0.0
    %v866 = vand.u32 %v127, 4294901760
    %867 = vmatpush1.xpose.msra.mxu0 %v866
    %868 = vmatprep.subr.mxu0 0.0
    %v869 = vand.u32 %v130, 4294901760
    %870 = vmatpush1.xpose.msra.mxu0 %v869
    %871 = vmatprep.subr.mxu0 0.0
    %v872 = vand.u32 %v133, 4294901760
    %873 = vmatpush1.xpose.msra.mxu0 %v872
    %874 = vmatprep.subr.mxu0 0.0
    %v875 = vand.u32 %v136, 4294901760
    %876 = vmatpush1.xpose.msra.mxu0 %v875
    %877 = vmatprep.subr.mxu0 0.0
    %v878 = vand.u32 %v139, 4294901760
    %879 = vmatpush1.xpose.msra.mxu0 %v878
    %880 = vmatprep.subr.mxu0 0.0
    %v881 = vand.u32 %v142, 4294901760
    %882 = vmatpush1.xpose.msra.mxu0 %v881
    %883 = vmatprep.subr.mxu0 0.0
    %884 = vmatpush1.xpose.msra.mxu0 0.0
    %885 = vmatprep.subr.mxu0 0.0
    %886 = vmatpush1.xpose.msra.mxu0 0.0
    %887 = vmatprep.subr.mxu0 0.0
    %888 = vmatpush1.xpose.msra.mxu0 0.0
    %889 = vmatprep.subr.mxu0 0.0
    %890 = vmatpush1.xpose.msra.mxu0 0.0
    %891 = vmatprep.subr.mxu0 0.0
    %892 = vmatpush1.xpose.msra.mxu0 0.0
    %893 = vmatprep.subr.mxu0 0.0
    %894 = vmatpush1.xpose.msra.mxu0 0.0
    %895 = vmatprep.subr.mxu0 0.0
    %896 = vmatpush1.xpose.msra.mxu0 0.0
    %897 = vmatprep.subr.mxu0 0.0
    %898 = vmatpush1.xpose.msra.mxu0 0.0
    %899 = vmatprep.subr.mxu0 0.0
    %900 = vmatpush1.xpose.msra.mxu0 0.0
    %901 = vmatprep.subr.mxu0 0.0
    %902 = vmatpush1.xpose.msra.mxu0 0.0
    %903 = vmatprep.subr.mxu0 0.0
    %904 = vmatpush1.xpose.msra.mxu0 0.0
    %905 = vmatprep.subr.mxu0 0.0
    %906 = vmatpush1.xpose.msra.mxu0 0.0
    %907 = vmatprep.subr.mxu0 0.0
    %908 = vmatpush1.xpose.msra.mxu0 0.0
    %909 = vmatprep.subr.mxu0 0.0
    %910 = vmatpush1.xpose.msra.mxu0 0.0
    %911 = vmatprep.subr.mxu0 0.0
    %912 = vmatpush1.xpose.msra.mxu0 0.0
    %913 = vmatprep.subr.mxu0 0.0
    %914 = vmatpush1.xpose.msra.mxu0 0.0
    %915 = vmatprep.mubr.f32.mxu0 0.0
    %v916 = vand.u32 %v49, 4294901760
    %v917 = vsub.f32 %v49, %v916
    %v918 = vand.u32 %v917, 4294901760
    %919 = vmatmul.mubr.f32.gmra.mrb[0].mxu0 %v918
    %v920 = vpop.f32.mrb[0].mxu0
    %v921 = vadd.f32 %v727, %v920
    %v922 = vpop.f32.mrb[0].mxu0
    %923 = vmatprep.mubr.f32.mxu0 0.0
    %v924 = vand.u32 %v52, 4294901760
    %v925 = vsub.f32 %v52, %v924
    %v926 = vand.u32 %v925, 4294901760
    %927 = vmatmul.mubr.f32.gmra.mrb[0].mxu0 %v926
    %v928 = vpop.f32.mrb[0].mxu0
    %v929 = vadd.f32 %v734, %v928
    %v930 = vpop.f32.mrb[0].mxu0
    %931 = vmatprep.mubr.f32.mxu0 0.0
    %v932 = vand.u32 %v55, 4294901760
    %v933 = vsub.f32 %v55, %v932
    %v934 = vand.u32 %v933, 4294901760
    %935 = vmatmul.mubr.f32.gmra.mrb[0].mxu0 %v934
    %v936 = vpop.f32.mrb[0].mxu0
    %v937 = vadd.f32 %v741, %v936
    %v938 = vpop.f32.mrb[0].mxu0
    %939 = vmatprep.mubr.f32.mxu0 0.0
    %v940 = vand.u32 %v58, 4294901760
    %v941 = vsub.f32 %v58, %v940
    %v942 = vand.u32 %v941, 4294901760
    %943 = vmatmul.mubr.f32.gmra.mrb[0].mxu0 %v942
    %v944 = vpop.f32.mrb[0].mxu0
    %v945 = vadd.f32 %v748, %v944
    %v946 = vpop.f32.mrb[0].mxu0
    %947 = vmatprep.mubr.f32.mxu0 0.0
    %v948 = vand.u32 %v61, 4294901760
    %v949 = vsub.f32 %v61, %v948
    %v950 = vand.u32 %v949, 4294901760
    %951 = vmatmul.mubr.f32.gmra.mrb[0].mxu0 %v950
    %v952 = vpop.f32.mrb[0].mxu0
    %v953 = vadd.f32 %v755, %v952
    %v954 = vpop.f32.mrb[0].mxu0
    %955 = vmatprep.mubr.f32.mxu0 0.0
    %v956 = vand.u32 %v64, 4294901760
    %v957 = vsub.f32 %v64, %v956
    %v958 = vand.u32 %v957, 4294901760
    %959 = vmatmul.mubr.f32.gmra.mrb[0].mxu0 %v958
    %v960 = vpop.f32.mrb[0].mxu0
    %v961 = vadd.f32 %v762, %v960
    %v962 = vpop.f32.mrb[0].mxu0
    %963 = vmatprep.mubr.f32.mxu0 0.0
    %v964 = vand.u32 %v67, 4294901760
    %v965 = vsub.f32 %v67, %v964
    %v966 = vand.u32 %v965, 4294901760
    %967 = vmatmul.mubr.f32.gmra.mrb[0].mxu0 %v966
    %v968 = vpop.f32.mrb[0].mxu0
    %v969 = vadd.f32 %v769, %v968
    %v970 = vpop.f32.mrb[0].mxu0
    %971 = vmatprep.mubr.f32.mxu0 0.0
    %v972 = vand.u32 %v70, 4294901760
    %v973 = vsub.f32 %v70, %v972
    %v974 = vand.u32 %v973, 4294901760
    %975 = vmatmul.mubr.f32.gmra.mrb[0].mxu0 %v974
    %v976 = vpop.f32.mrb[0].mxu0
    %v977 = vadd.f32 %v776, %v976
    %v978 = vpop.f32.mrb[0].mxu0
    %979 = vmatprep.mubr.f32.mxu0 0.0
    %v980 = vand.u32 %v73, 4294901760
    %v981 = vsub.f32 %v73, %v980
    %v982 = vand.u32 %v981, 4294901760
    %983 = vmatmul.mubr.f32.gmra.mrb[0].mxu0 %v982
    %v984 = vpop.f32.mrb[0].mxu0
    %v985 = vadd.f32 %v783, %v984
    %v986 = vpop.f32.mrb[0].mxu0
    %987 = vmatprep.mubr.f32.mxu0 0.0
    %v988 = vand.u32 %v76, 4294901760
    %v989 = vsub.f32 %v76, %v988
    %v990 = vand.u32 %v989, 4294901760
    %991 = vmatmul.mubr.f32.gmra.mrb[0].mxu0 %v990
    %v992 = vpop.f32.mrb[0].mxu0
    %v993 = vadd.f32 %v790, %v992
    %v994 = vpop.f32.mrb[0].mxu0
    %995 = vmatprep.mubr.f32.mxu0 0.0
    %v996 = vand.u32 %v79, 4294901760
    %v997 = vsub.f32 %v79, %v996
    %v998 = vand.u32 %v997, 4294901760
    %999 = vmatmul.mubr.f32.gmra.mrb[0].mxu0 %v998
    %v1000 = vpop.f32.mrb[0].mxu0
    %v1001 = vadd.f32 %v797, %v1000
    %v1002 = vpop.f32.mrb[0].mxu0
    %1003 = vmatprep.mubr.f32.mxu0 0.0
    %v1004 = vand.u32 %v82, 4294901760
    %v1005 = vsub.f32 %v82, %v1004
    %v1006 = vand.u32 %v1005, 4294901760
    %1007 = vmatmul.mubr.f32.gmra.mrb[0].mxu0 %v1006
    %v1008 = vpop.f32.mrb[0].mxu0
    %v1009 = vadd.f32 %v804, %v1008
    %v1010 = vpop.f32.mrb[0].mxu0
    %1011 = vmatprep.mubr.f32.mxu0 0.0
    %v1012 = vand.u32 %v85, 4294901760
    %v1013 = vsub.f32 %v85, %v1012
    %v1014 = vand.u32 %v1013, 4294901760
    %1015 = vmatmul.mubr.f32.gmra.mrb[0].mxu0 %v1014
    %v1016 = vpop.f32.mrb[0].mxu0
    %v1017 = vadd.f32 %v811, %v1016
    %v1018 = vpop.f32.mrb[0].mxu0
    %1019 = vmatprep.mubr.f32.mxu0 0.0
    %v1020 = vand.u32 %v88, 4294901760
    %v1021 = vsub.f32 %v88, %v1020
    %v1022 = vand.u32 %v1021, 4294901760
    %1023 = vmatmul.mubr.f32.gmra.mrb[0].mxu0 %v1022
    %v1024 = vpop.f32.mrb[0].mxu0
    %v1025 = vadd.f32 %v818, %v1024
    %v1026 = vpop.f32.mrb[0].mxu0
    %1027 = vmatprep.mubr.f32.mxu0 0.0
    %v1028 = vand.u32 %v91, 4294901760
    %v1029 = vsub.f32 %v91, %v1028
    %v1030 = vand.u32 %v1029, 4294901760
    %1031 = vmatmul.mubr.f32.gmra.mrb[0].mxu0 %v1030
    %v1032 = vpop.f32.mrb[0].mxu0
    %v1033 = vadd.f32 %v825, %v1032
    %v1034 = vpop.f32.mrb[0].mxu0
    %1035 = vmatprep.mubr.f32.mxu0 0.0
    %v1036 = vand.u32 %v94, 4294901760
    %v1037 = vsub.f32 %v94, %v1036
    %v1038 = vand.u32 %v1037, 4294901760
    %1039 = vmatmul.mubr.f32.gmra.mrb[0].mxu0 %v1038
    %v1040 = vpop.f32.mrb[0].mxu0
    %v1041 = vadd.f32 %v832, %v1040
    %v1042 = vpop.f32.mrb[0].mxu0
    %1043 = vdwg.mxu0
    %1044 = vmatprep.subr.mxu0 0.0
    %v1045 = vand.u32 %v97, 4294901760
    %v1046 = vsub.f32 %v97, %v1045
    %v1047 = vand.u32 %v1046, 4294901760
    %1048 = vmatpush1.xpose.msra.mxu0 %v1047
    %1049 = vmatprep.subr.mxu0 0.0
    %v1050 = vand.u32 %v100, 4294901760
    %v1051 = vsub.f32 %v100, %v1050
    %v1052 = vand.u32 %v1051, 4294901760
    %1053 = vmatpush1.xpose.msra.mxu0 %v1052
    %1054 = vmatprep.subr.mxu0 0.0
    %v1055 = vand.u32 %v103, 4294901760
    %v1056 = vsub.f32 %v103, %v1055
    %v1057 = vand.u32 %v1056, 4294901760
    %1058 = vmatpush1.xpose.msra.mxu0 %v1057
    %1059 = vmatprep.subr.mxu0 0.0
    %v1060 = vand.u32 %v106, 4294901760
    %v1061 = vsub.f32 %v106, %v1060
    %v1062 = vand.u32 %v1061, 4294901760
    %1063 = vmatpush1.xpose.msra.mxu0 %v1062
    %1064 = vmatprep.subr.mxu0 0.0
    %v1065 = vand.u32 %v109, 4294901760
    %v1066 = vsub.f32 %v109, %v1065
    %v1067 = vand.u32 %v1066, 4294901760
    %1068 = vmatpush1.xpose.msra.mxu0 %v1067
    %1069 = vmatprep.subr.mxu0 0.0
    %v1070 = vand.u32 %v112, 4294901760
    %v1071 = vsub.f32 %v112, %v1070
    %v1072 = vand.u32 %v1071, 4294901760
    %1073 = vmatpush1.xpose.msra.mxu0 %v1072
    %1074 = vmatprep.subr.mxu0 0.0
    %v1075 = vand.u32 %v115, 4294901760
    %v1076 = vsub.f32 %v115, %v1075
    %v1077 = vand.u32 %v1076, 4294901760
    %1078 = vmatpush1.xpose.msra.mxu0 %v1077
    %1079 = vmatprep.subr.mxu0 0.0
    %v1080 = vand.u32 %v118, 4294901760
    %v1081 = vsub.f32 %v118, %v1080
    %v1082 = vand.u32 %v1081, 4294901760
    %1083 = vmatpush1.xpose.msra.mxu0 %v1082
    %1084 = vmatprep.subr.mxu0 0.0
    %v1085 = vand.u32 %v121, 4294901760
    %v1086 = vsub.f32 %v121, %v1085
    %v1087 = vand.u32 %v1086, 4294901760
    %1088 = vmatpush1.xpose.msra.mxu0 %v1087
    %1089 = vmatprep.subr.mxu0 0.0
    %v1090 = vand.u32 %v124, 4294901760
    %v1091 = vsub.f32 %v124, %v1090
    %v1092 = vand.u32 %v1091, 4294901760
    %1093 = vmatpush1.xpose.msra.mxu0 %v1092
    %1094 = vmatprep.subr.mxu0 0.0
    %v1095 = vand.u32 %v127, 4294901760
    %v1096 = vsub.f32 %v127, %v1095
    %v1097 = vand.u32 %v1096, 4294901760
    %1098 = vmatpush1.xpose.msra.mxu0 %v1097
    %1099 = vmatprep.subr.mxu0 0.0
    %v1100 = vand.u32 %v130, 4294901760
    %v1101 = vsub.f32 %v130, %v1100
    %v1102 = vand.u32 %v1101, 4294901760
    %1103 = vmatpush1.xpose.msra.mxu0 %v1102
    %1104 = vmatprep.subr.mxu0 0.0
    %v1105 = vand.u32 %v133, 4294901760
    %v1106 = vsub.f32 %v133, %v1105
    %v1107 = vand.u32 %v1106, 4294901760
    %1108 = vmatpush1.xpose.msra.mxu0 %v1107
    %1109 = vmatprep.subr.mxu0 0.0
    %v1110 = vand.u32 %v136, 4294901760
    %v1111 = vsub.f32 %v136, %v1110
    %v1112 = vand.u32 %v1111, 4294901760
    %1113 = vmatpush1.xpose.msra.mxu0 %v1112
    %1114 = vmatprep.subr.mxu0 0.0
    %v1115 = vand.u32 %v139, 4294901760
    %v1116 = vsub.f32 %v139, %v1115
    %v1117 = vand.u32 %v1116, 4294901760
    %1118 = vmatpush1.xpose.msra.mxu0 %v1117
    %1119 = vmatprep.subr.mxu0 0.0
    %v1120 = vand.u32 %v142, 4294901760
    %v1121 = vsub.f32 %v142, %v1120
    %v1122 = vand.u32 %v1121, 4294901760
    %1123 = vmatpush1.xpose.msra.mxu0 %v1122
    %1124 = vmatprep.subr.mxu0 0.0
    %1125 = vmatpush1.xpose.msra.mxu0 0.0
    %1126 = vmatprep.subr.mxu0 0.0
    %1127 = vmatpush1.xpose.msra.mxu0 0.0
    %1128 = vmatprep.subr.mxu0 0.0
    %1129 = vmatpush1.xpose.msra.mxu0 0.0
    %1130 = vmatprep.subr.mxu0 0.0
    %1131 = vmatpush1.xpose.msra.mxu0 0.0
    %1132 = vmatprep.subr.mxu0 0.0
    %1133 = vmatpush1.xpose.msra.mxu0 0.0
    %1134 = vmatprep.subr.mxu0 0.0
    %1135 = vmatpush1.xpose.msra.mxu0 0.0
    %1136 = vmatprep.subr.mxu0 0.0
    %1137 = vmatpush1.xpose.msra.mxu0 0.0
    %1138 = vmatprep.subr.mxu0 0.0
    %1139 = vmatpush1.xpose.msra.mxu0 0.0
    %1140 = vmatprep.subr.mxu0 0.0
    %1141 = vmatpush1.xpose.msra.mxu0 0.0
    %1142 = vmatprep.subr.mxu0 0.0
    %1143 = vmatpush1.xpose.msra.mxu0 0.0
    %1144 = vmatprep.subr.mxu0 0.0
    %1145 = vmatpush1.xpose.msra.mxu0 0.0
    %1146 = vmatprep.subr.mxu0 0.0
    %1147 = vmatpush1.xpose.msra.mxu0 0.0
    %1148 = vmatprep.subr.mxu0 0.0
    %1149 = vmatpush1.xpose.msra.mxu0 0.0
    %1150 = vmatprep.subr.mxu0 0.0
    %1151 = vmatpush1.xpose.msra.mxu0 0.0
    %1152 = vmatprep.subr.mxu0 0.0
    %1153 = vmatpush1.xpose.msra.mxu0 0.0
    %1154 = vmatprep.subr.mxu0 0.0
    %1155 = vmatpush1.xpose.msra.mxu0 0.0
    %1156 = vmatprep.mubr.f32.mxu0 0.0
    %v1157 = vand.u32 %v49, 4294901760
    %1158 = vmatmul.mubr.f32.gmra.mrb[0].mxu0 %v1157
    %v1159 = vpop.f32.mrb[0].mxu0
    %v1160 = vadd.f32 %v921, %v1159
    %v1161 = vpop.f32.mrb[0].mxu0
    %1162 = vmatprep.mubr.f32.mxu0 0.0
    %v1163 = vand.u32 %v52, 4294901760
    %1164 = vmatmul.mubr.f32.gmra.mrb[0].mxu0 %v1163
    %v1165 = vpop.f32.mrb[0].mxu0
    %v1166 = vadd.f32 %v929, %v1165
    %v1167 = vpop.f32.mrb[0].mxu0
    %1168 = vmatprep.mubr.f32.mxu0 0.0
    %v1169 = vand.u32 %v55, 4294901760
    %1170 = vmatmul.mubr.f32.gmra.mrb[0].mxu0 %v1169
    %v1171 = vpop.f32.mrb[0].mxu0
    %v1172 = vadd.f32 %v937, %v1171
    %v1173 = vpop.f32.mrb[0].mxu0
    %1174 = vmatprep.mubr.f32.mxu0 0.0
    %v1175 = vand.u32 %v58, 4294901760
    %1176 = vmatmul.mubr.f32.gmra.mrb[0].mxu0 %v1175
    %v1177 = vpop.f32.mrb[0].mxu0
    %v1178 = vadd.f32 %v945, %v1177
    %v1179 = vpop.f32.mrb[0].mxu0
    %1180 = vmatprep.mubr.f32.mxu0 0.0
    %v1181 = vand.u32 %v61, 4294901760
    %1182 = vmatmul.mubr.f32.gmra.mrb[0].mxu0 %v1181
    %v1183 = vpop.f32.mrb[0].mxu0
    %v1184 = vadd.f32 %v953, %v1183
    %v1185 = vpop.f32.mrb[0].mxu0
    %1186 = vmatprep.mubr.f32.mxu0 0.0
    %v1187 = vand.u32 %v64, 4294901760
    %1188 = vmatmul.mubr.f32.gmra.mrb[0].mxu0 %v1187
    %v1189 = vpop.f32.mrb[0].mxu0
    %v1190 = vadd.f32 %v961, %v1189
    %v1191 = vpop.f32.mrb[0].mxu0
    %1192 = vmatprep.mubr.f32.mxu0 0.0
    %v1193 = vand.u32 %v67, 4294901760
    %1194 = vmatmul.mubr.f32.gmra.mrb[0].mxu0 %v1193
    %v1195 = vpop.f32.mrb[0].mxu0
    %v1196 = vadd.f32 %v969, %v1195
    %v1197 = vpop.f32.mrb[0].mxu0
    %1198 = vmatprep.mubr.f32.mxu0 0.0
    %v1199 = vand.u32 %v70, 4294901760
    %1200 = vmatmul.mubr.f32.gmra.mrb[0].mxu0 %v1199
    %v1201 = vpop.f32.mrb[0].mxu0
    %v1202 = vadd.f32 %v977, %v1201
    %v1203 = vpop.f32.mrb[0].mxu0
    %1204 = vmatprep.mubr.f32.mxu0 0.0
    %v1205 = vand.u32 %v73, 4294901760
    %1206 = vmatmul.mubr.f32.gmra.mrb[0].mxu0 %v1205
    %v1207 = vpop.f32.mrb[0].mxu0
    %v1208 = vadd.f32 %v985, %v1207
    %v1209 = vpop.f32.mrb[0].mxu0
    %1210 = vmatprep.mubr.f32.mxu0 0.0
    %v1211 = vand.u32 %v76, 4294901760
    %1212 = vmatmul.mubr.f32.gmra.mrb[0].mxu0 %v1211
    %v1213 = vpop.f32.mrb[0].mxu0
    %v1214 = vadd.f32 %v993, %v1213
    %v1215 = vpop.f32.mrb[0].mxu0
    %1216 = vmatprep.mubr.f32.mxu0 0.0
    %v1217 = vand.u32 %v79, 4294901760
    %1218 = vmatmul.mubr.f32.gmra.mrb[0].mxu0 %v1217
    %v1219 = vpop.f32.mrb[0].mxu0
    %v1220 = vadd.f32 %v1001, %v1219
    %v1221 = vpop.f32.mrb[0].mxu0
    %1222 = vmatprep.mubr.f32.mxu0 0.0
    %v1223 = vand.u32 %v82, 4294901760
    %1224 = vmatmul.mubr.f32.gmra.mrb[0].mxu0 %v1223
    %v1225 = vpop.f32.mrb[0].mxu0
    %v1226 = vadd.f32 %v1009, %v1225
    %v1227 = vpop.f32.mrb[0].mxu0
    %1228 = vmatprep.mubr.f32.mxu0 0.0
    %v1229 = vand.u32 %v85, 4294901760
    %1230 = vmatmul.mubr.f32.gmra.mrb[0].mxu0 %v1229
    %v1231 = vpop.f32.mrb[0].mxu0
    %v1232 = vadd.f32 %v1017, %v1231
    %v1233 = vpop.f32.mrb[0].mxu0
    %1234 = vmatprep.mubr.f32.mxu0 0.0
    %v1235 = vand.u32 %v88, 4294901760
    %1236 = vmatmul.mubr.f32.gmra.mrb[0].mxu0 %v1235
    %v1237 = vpop.f32.mrb[0].mxu0
    %v1238 = vadd.f32 %v1025, %v1237
    %v1239 = vpop.f32.mrb[0].mxu0
    %1240 = vmatprep.mubr.f32.mxu0 0.0
    %v1241 = vand.u32 %v91, 4294901760
    %1242 = vmatmul.mubr.f32.gmra.mrb[0].mxu0 %v1241
    %v1243 = vpop.f32.mrb[0].mxu0
    %v1244 = vadd.f32 %v1033, %v1243
    %v1245 = vpop.f32.mrb[0].mxu0
    %1246 = vmatprep.mubr.f32.mxu0 0.0
    %v1247 = vand.u32 %v94, 4294901760
    %1248 = vmatmul.mubr.f32.gmra.mrb[0].mxu0 %v1247
    %v1249 = vpop.f32.mrb[0].mxu0
    %v1250 = vadd.f32 %v1041, %v1249
    %v1251 = vpop.f32.mrb[0].mxu0
    %1252 = vdwg.mxu0
    %1253 = vmatprep.subr.mxu0 0.0
    %v1254 = vand.u32 %v97, 4294901760
    %1255 = vmatpush1.xpose.msra.mxu0 %v1254
    %1256 = vmatprep.subr.mxu0 0.0
    %v1257 = vand.u32 %v100, 4294901760
    %1258 = vmatpush1.xpose.msra.mxu0 %v1257
    %1259 = vmatprep.subr.mxu0 0.0
    %v1260 = vand.u32 %v103, 4294901760
    %1261 = vmatpush1.xpose.msra.mxu0 %v1260
    %1262 = vmatprep.subr.mxu0 0.0
    %v1263 = vand.u32 %v106, 4294901760
    %1264 = vmatpush1.xpose.msra.mxu0 %v1263
    %1265 = vmatprep.subr.mxu0 0.0
    %v1266 = vand.u32 %v109, 4294901760
    %1267 = vmatpush1.xpose.msra.mxu0 %v1266
    %1268 = vmatprep.subr.mxu0 0.0
    %v1269 = vand.u32 %v112, 4294901760
    %1270 = vmatpush1.xpose.msra.mxu0 %v1269
    %1271 = vmatprep.subr.mxu0 0.0
    %v1272 = vand.u32 %v115, 4294901760
    %1273 = vmatpush1.xpose.msra.mxu0 %v1272
    %1274 = vmatprep.subr.mxu0 0.0
    %v1275 = vand.u32 %v118, 4294901760
    %1276 = vmatpush1.xpose.msra.mxu0 %v1275
    %1277 = vmatprep.subr.mxu0 0.0
    %v1278 = vand.u32 %v121, 4294901760
    %1279 = vmatpush1.xpose.msra.mxu0 %v1278
    %1280 = vmatprep.subr.mxu0 0.0
    %v1281 = vand.u32 %v124, 4294901760
    %1282 = vmatpush1.xpose.msra.mxu0 %v1281
    %1283 = vmatprep.subr.mxu0 0.0
    %v1284 = vand.u32 %v127, 4294901760
    %1285 = vmatpush1.xpose.msra.mxu0 %v1284
    %1286 = vmatprep.subr.mxu0 0.0
    %v1287 = vand.u32 %v130, 4294901760
    %1288 = vmatpush1.xpose.msra.mxu0 %v1287
    %1289 = vmatprep.subr.mxu0 0.0
    %v1290 = vand.u32 %v133, 4294901760
    %1291 = vmatpush1.xpose.msra.mxu0 %v1290
    %1292 = vmatprep.subr.mxu0 0.0
    %v1293 = vand.u32 %v136, 4294901760
    %1294 = vmatpush1.xpose.msra.mxu0 %v1293
    %1295 = vmatprep.subr.mxu0 0.0
    %v1296 = vand.u32 %v139, 4294901760
    %1297 = vmatpush1.xpose.msra.mxu0 %v1296
    %1298 = vmatprep.subr.mxu0 0.0
    %v1299 = vand.u32 %v142, 4294901760
    %1300 = vmatpush1.xpose.msra.mxu0 %v1299
    %1301 = vmatprep.subr.mxu0 0.0
    %1302 = vmatpush1.xpose.msra.mxu0 0.0
    %1303 = vmatprep.subr.mxu0 0.0
    %1304 = vmatpush1.xpose.msra.mxu0 0.0
    %1305 = vmatprep.subr.mxu0 0.0
    %1306 = vmatpush1.xpose.msra.mxu0 0.0
    %1307 = vmatprep.subr.mxu0 0.0
    %1308 = vmatpush1.xpose.msra.mxu0 0.0
    %1309 = vmatprep.subr.mxu0 0.0
    %1310 = vmatpush1.xpose.msra.mxu0 0.0
    %1311 = vmatprep.subr.mxu0 0.0
    %1312 = vmatpush1.xpose.msra.mxu0 0.0
    %1313 = vmatprep.subr.mxu0 0.0
    %1314 = vmatpush1.xpose.msra.mxu0 0.0
    %1315 = vmatprep.subr.mxu0 0.0
    %1316 = vmatpush1.xpose.msra.mxu0 0.0
    %1317 = vmatprep.subr.mxu0 0.0
    %1318 = vmatpush1.xpose.msra.mxu0 0.0
    %1319 = vmatprep.subr.mxu0 0.0
    %1320 = vmatpush1.xpose.msra.mxu0 0.0
    %1321 = vmatprep.subr.mxu0 0.0
    %1322 = vmatpush1.xpose.msra.mxu0 0.0
    %1323 = vmatprep.subr.mxu0 0.0
    %1324 = vmatpush1.xpose.msra.mxu0 0.0
    %1325 = vmatprep.subr.mxu0 0.0
    %1326 = vmatpush1.xpose.msra.mxu0 0.0
    %1327 = vmatprep.subr.mxu0 0.0
    %1328 = vmatpush1.xpose.msra.mxu0 0.0
    %1329 = vmatprep.subr.mxu0 0.0
    %1330 = vmatpush1.xpose.msra.mxu0 0.0
    %1331 = vmatprep.subr.mxu0 0.0
    %1332 = vmatpush1.xpose.msra.mxu0 0.0
    %1333 = vmatprep.mubr.f32.mxu0 0.0
    %v1334 = vand.u32 %v49, 4294901760
    %1335 = vmatmul.mubr.f32.gmra.mrb[0].mxu0 %v1334
    %v1336 = vpop.f32.mrb[0].mxu0
    %v1337 = vadd.f32 %v1160, %v1336
    %v1338 = vpop.f32.mrb[0].mxu0
    %1339 = vmatprep.mubr.f32.mxu0 0.0
    %v1340 = vand.u32 %v52, 4294901760
    %1341 = vmatmul.mubr.f32.gmra.mrb[0].mxu0 %v1340
    %v1342 = vpop.f32.mrb[0].mxu0
    %v1343 = vadd.f32 %v1166, %v1342
    %v1344 = vpop.f32.mrb[0].mxu0
    %1345 = vmatprep.mubr.f32.mxu0 0.0
    %v1346 = vand.u32 %v55, 4294901760
    %1347 = vmatmul.mubr.f32.gmra.mrb[0].mxu0 %v1346
    %v1348 = vpop.f32.mrb[0].mxu0
    %v1349 = vadd.f32 %v1172, %v1348
    %v1350 = vpop.f32.mrb[0].mxu0
    %1351 = vmatprep.mubr.f32.mxu0 0.0
    %v1352 = vand.u32 %v58, 4294901760
    %1353 = vmatmul.mubr.f32.gmra.mrb[0].mxu0 %v1352
    %v1354 = vpop.f32.mrb[0].mxu0
    %v1355 = vadd.f32 %v1178, %v1354
    %v1356 = vpop.f32.mrb[0].mxu0
    %1357 = vmatprep.mubr.f32.mxu0 0.0
    %v1358 = vand.u32 %v61, 4294901760
    %1359 = vmatmul.mubr.f32.gmra.mrb[0].mxu0 %v1358
    %v1360 = vpop.f32.mrb[0].mxu0
    %v1361 = vadd.f32 %v1184, %v1360
    %v1362 = vpop.f32.mrb[0].mxu0
    %1363 = vmatprep.mubr.f32.mxu0 0.0
    %v1364 = vand.u32 %v64, 4294901760
    %1365 = vmatmul.mubr.f32.gmra.mrb[0].mxu0 %v1364
    %v1366 = vpop.f32.mrb[0].mxu0
    %v1367 = vadd.f32 %v1190, %v1366
    %v1368 = vpop.f32.mrb[0].mxu0
    %1369 = vmatprep.mubr.f32.mxu0 0.0
    %v1370 = vand.u32 %v67, 4294901760
    %1371 = vmatmul.mubr.f32.gmra.mrb[0].mxu0 %v1370
    %v1372 = vpop.f32.mrb[0].mxu0
    %v1373 = vadd.f32 %v1196, %v1372
    %v1374 = vpop.f32.mrb[0].mxu0
    %1375 = vmatprep.mubr.f32.mxu0 0.0
    %v1376 = vand.u32 %v70, 4294901760
    %1377 = vmatmul.mubr.f32.gmra.mrb[0].mxu0 %v1376
    %v1378 = vpop.f32.mrb[0].mxu0
    %v1379 = vadd.f32 %v1202, %v1378
    %v1380 = vpop.f32.mrb[0].mxu0
    %1381 = vmatprep.mubr.f32.mxu0 0.0
    %v1382 = vand.u32 %v73, 4294901760
    %1383 = vmatmul.mubr.f32.gmra.mrb[0].mxu0 %v1382
    %v1384 = vpop.f32.mrb[0].mxu0
    %v1385 = vadd.f32 %v1208, %v1384
    %v1386 = vpop.f32.mrb[0].mxu0
    %1387 = vmatprep.mubr.f32.mxu0 0.0
    %v1388 = vand.u32 %v76, 4294901760
    %1389 = vmatmul.mubr.f32.gmra.mrb[0].mxu0 %v1388
    %v1390 = vpop.f32.mrb[0].mxu0
    %v1391 = vadd.f32 %v1214, %v1390
    %v1392 = vpop.f32.mrb[0].mxu0
    %1393 = vmatprep.mubr.f32.mxu0 0.0
    %v1394 = vand.u32 %v79, 4294901760
    %1395 = vmatmul.mubr.f32.gmra.mrb[0].mxu0 %v1394
    %v1396 = vpop.f32.mrb[0].mxu0
    %v1397 = vadd.f32 %v1220, %v1396
    %v1398 = vpop.f32.mrb[0].mxu0
    %1399 = vmatprep.mubr.f32.mxu0 0.0
    %v1400 = vand.u32 %v82, 4294901760
    %1401 = vmatmul.mubr.f32.gmra.mrb[0].mxu0 %v1400
    %v1402 = vpop.f32.mrb[0].mxu0
    %v1403 = vadd.f32 %v1226, %v1402
    %v1404 = vpop.f32.mrb[0].mxu0
    %1405 = vmatprep.mubr.f32.mxu0 0.0
    %v1406 = vand.u32 %v85, 4294901760
    %1407 = vmatmul.mubr.f32.gmra.mrb[0].mxu0 %v1406
    %v1408 = vpop.f32.mrb[0].mxu0
    %v1409 = vadd.f32 %v1232, %v1408
    %v1410 = vpop.f32.mrb[0].mxu0
    %1411 = vmatprep.mubr.f32.mxu0 0.0
    %v1412 = vand.u32 %v88, 4294901760
    %1413 = vmatmul.mubr.f32.gmra.mrb[0].mxu0 %v1412
    %v1414 = vpop.f32.mrb[0].mxu0
    %v1415 = vadd.f32 %v1238, %v1414
    %v1416 = vpop.f32.mrb[0].mxu0
    %1417 = vmatprep.mubr.f32.mxu0 0.0
    %v1418 = vand.u32 %v91, 4294901760
    %1419 = vmatmul.mubr.f32.gmra.mrb[0].mxu0 %v1418
    %v1420 = vpop.f32.mrb[0].mxu0
    %v1421 = vadd.f32 %v1244, %v1420
    %v1422 = vpop.f32.mrb[0].mxu0
    %1423 = vmatprep.mubr.f32.mxu0 0.0
    %v1424 = vand.u32 %v94, 4294901760
    %1425 = vmatmul.mubr.f32.gmra.mrb[0].mxu0 %v1424
    %v1426 = vpop.f32.mrb[0].mxu0
    %v1427 = vadd.f32 %v1250, %v1426
    %v1428 = vpop.f32.mrb[0].mxu0
    %1429 = vdwg.mxu0
    %v1430 = vld [vmem:[%s2] sm:$0xff]
    %v1431 = vld [vmem:[%s2 + $0x8] sm:$0xff]
    %v1432 = vadd.f32 %v1337, %v1430
    %v1433 = vadd.f32 %v1343, %v1431
    %v1434 = vadd.f32 %v1349, %v1430
    %v1435 = vadd.f32 %v1355, %v1431
    %v1436 = vadd.f32 %v1361, %v1430
    %v1437 = vadd.f32 %v1367, %v1431
    %v1438 = vadd.f32 %v1373, %v1430
    %v1439 = vadd.f32 %v1379, %v1431
    %v1440 = vadd.f32 %v1385, %v1430
    %v1441 = vadd.f32 %v1391, %v1431
    %v1442 = vadd.f32 %v1397, %v1430
    %v1443 = vadd.f32 %v1403, %v1431
    %v1444 = vadd.f32 %v1409, %v1430
    %v1445 = vadd.f32 %v1415, %v1431
    %v1446 = vadd.f32 %v1421, %v1430
    %v1447 = vadd.f32 %v1427, %v1431
    %1448 = vst [vmem:[#allocation2] sm:$0xff] %v1432
    %1449 = vst [vmem:[#allocation2 + $0x8] sm:$0xff] %v1433
    %1450 = vst [vmem:[#allocation2 + $0x10] sm:$0xff] %v1434
    %1451 = vst [vmem:[#allocation2 + $0x18] sm:$0xff] %v1435
    %1452 = vst [vmem:[#allocation2 + $0x20] sm:$0xff] %v1436
    %1453 = vst [vmem:[#allocation2 + $0x28] sm:$0xff] %v1437
    %1454 = vst [vmem:[#allocation2 + $0x30] sm:$0xff] %v1438
    %1455 = vst [vmem:[#allocation2 + $0x38] sm:$0xff] %v1439
    %1456 = vst [vmem:[#allocation2 + $0x40] sm:$0xff] %v1440
    %1457 = vst [vmem:[#allocation2 + $0x48] sm:$0xff] %v1441
    %1458 = vst [vmem:[#allocation2 + $0x50] sm:$0xff] %v1442
    %1459 = vst [vmem:[#allocation2 + $0x58] sm:$0xff] %v1443
    %1460 = vst [vmem:[#allocation2 + $0x60] sm:$0xff] %v1444
    %1461 = vst [vmem:[#allocation2 + $0x68] sm:$0xff] %v1445
    %1462 = vst [vmem:[#allocation2 + $0x70] sm:$0xff] %v1446
    %1463 = vst [vmem:[#allocation2 + $0x78] sm:$0xff] %v1447
    // Predicated region
    $region14: #{tpu_custom_call.1} parent=1 // pred_check
      _
    $region15: #{tpu_custom_call.1} parent=1 // pred_check_branch
      %1465 = sbr.rel (0) target = $region17
    $region16: #{tpu_custom_call.1} parent=1 // pred_region
      %s1467 = ssub.s32 2048, 2048
      %1468 = vsyncadd [#allocation3], %s1467
      %s1469 = sshll.u32 [#allocation2], 4
      %s1470 = int_to_ptr.vmem [resolvable:$true] %s1469
      %1475 = dma.vmem_to_hbm [thread:$0]  %s1470, 2048, %s3, [#allocation3], 128, 128, 8
    $region17: #{tpu_custom_call.1} parent=1 // pred_fallthru
      _
    // Predicated region
    $region18: #{tpu_custom_call.1} parent=1 // pred_check
      _
    $region19: #{tpu_custom_call.1} parent=1 // pred_check_branch
      %1477 = sbr.rel (0) target = $region21
    $region20: #{tpu_custom_call.1} parent=1 // pred_region
      %1478 = dma.done [#allocation3], 2048
    $region21: #{tpu_custom_call.1} parent=1 // pred_fallthru
      _
    %1479 = vsyncpa [#allocation3], 1

</llo_original>
